<compile_context>
chip_gen: v7x
topology: tpu7x:2x2x1
jax: 0.10.0
libtpu: 0.0.40
codegen_flags: <defaults>
</compile_context>

<pallas_src>
import functools

import jax
import jax.numpy as jnp
from jax.experimental import pallas as pl
from jax.experimental.pallas import tpu as pltpu


def _round_up(v, m):
    return (v + m - 1) // m * m


def output_lengths(in_lengths, kernel_size, stride, dilation):
    padding = dilation * (kernel_size - 1) // 2
    return (in_lengths + 2 * padding
            - dilation * (kernel_size - 1) + stride - 1) // stride


# --------------------------------------------------------------------------- #
# Shared conv body: K taps folded into one MXU contraction.
# --------------------------------------------------------------------------- #
def _conv_tile(x_ref, w_ref, *, kernel_size, stride, dilation, tile_t):
    """x_ref block: (1, 1, C_in_p, win)  NCW halo window (time on lanes)
       w_ref block: (C_out_p, K*C_in_p)  taps folded into the contraction
       returns      (C_out_p, tile_t) float32
    """
    if stride == 1:
        xw = x_ref[0, 0]                                     # (C_in_p, win)
        taps = [xw[:, k * dilation: k * dilation + tile_t]
                for k in range(kernel_size)]
    else:
        # Strided window read pushed into the load path (per review).
        taps = [x_ref[0, 0, :, pl.ds(k * dilation, tile_t, stride=stride)]
                for k in range(kernel_size)]
    slab = taps[0] if kernel_size == 1 else jnp.concatenate(taps, axis=0)
    return jnp.dot(w_ref[...], slab, preferred_element_type=jnp.float32)


# --------------------------------------------------------------------------- #
# Pass 1: conv tile -> per-tile BN partial sums only (no y_pre written).
# --------------------------------------------------------------------------- #
def _conv_stats_kernel(x_ref, w_ref, stats_ref, *, kernel_size, stride, dilation,
                       tile_t, t_out):
    t = pl.program_id(1)
    acc = _conv_tile(x_ref, w_ref, kernel_size=kernel_size, stride=stride,
                     dilation=dilation, tile_t=tile_t)        # (C_out_p, tile_t)

    # Mask pure tile-padding columns (beyond the true T_out).  Frames past
    # x_lengths are NOT masked: PyTorch BatchNorm1d uses every (B, T_out) frame.
    col = jax.lax.broadcasted_iota(jnp.int32, (1, tile_t), 1)
    valid = col < (t_out - t * tile_t)
    accm = jnp.where(valid, acc, 0.0)

    stats_ref[0, 0] = jnp.concatenate(
        [jnp.sum(accm, axis=1, keepdims=True),
         jnp.sum(accm * accm, axis=1, keepdims=True)], axis=1)   # (C_out_p, 2)


# --------------------------------------------------------------------------- #
# Pass 2: recompute conv, fused BN scale/shift + ReLU, write NCW output.
# --------------------------------------------------------------------------- #
def _conv_bn_relu_kernel(x_ref, w_ref, scale_ref, shift_ref, o_ref, *,
                         kernel_size, stride, dilation, tile_t):
    acc = _conv_tile(x_ref, w_ref, kernel_size=kernel_size, stride=stride,
                     dilation=dilation, tile_t=tile_t)        # (C_out_p, tile_t)
    z = acc * scale_ref[...] + shift_ref[...]                 # one FMA / element
    o_ref[0] = jnp.maximum(z, 0.0).astype(o_ref.dtype)


# --------------------------------------------------------------------------- #
# Wrapper
# --------------------------------------------------------------------------- #
def tdnn_bn_relu_forward(x, x_lengths, params, *, kernel_size, stride=1,
                         dilation=1, eps=1e-5, use_bf16_matmul=True, tile_t=None):
    """x: (B, C_in, T) float32 (PyTorch NCW); x_lengths: (B,) int32."""
    weight = params["weight"]            # (C_out, C_in, K)  PyTorch Conv1d layout
    gamma = params["gamma"]              # (C_out,)
    beta = params["beta"]                # (C_out,)
    # params["bias"] intentionally unused: with train-mode BatchNorm the conv
    # bias cancels exactly in (y - mean(y)).

    B, C_in, T = x.shape
    C_out = weight.shape[0]
    K = kernel_size
    P = dilation * (K - 1) // 2
    T_out = (T + 2 * P - dilation * (K - 1) + stride - 1) // stride

    dt = jnp.bfloat16 if use_bf16_matmul else jnp.float32
    c_mult = 16 if use_bf16_matmul else 8           # native sublane tile / dtype
    C_in_p = _round_up(C_in, c_mult)
    C_out_p = _round_up(C_out, 8)

    if tile_t is None:
        tile_t = min(512, 128 * max(1, T_out // 128))
    else:
        tile_t = _round_up(tile_t, 128)
    n_t = pl.cdiv(T_out, tile_t)
    step = tile_t * stride
    win = (tile_t - 1) * stride + (K - 1) * dilation + 1
    # Output time axis is exact whenever a full 128-multiple tile fits; only the
    # tiny T_out < 128 case pads (and is sliced back in the wrapper).
    T_out_grid = max(T_out, tile_t)

    # ---- glue: NCW stays NCW; build per-tile halo windows of x once ----
    T_in_need = (n_t - 1) * step + win
    pad_right = max(0, T_in_need - (T + P))
    x_p = jnp.pad(x.astype(dt), ((0, 0), (0, C_in_p - C_in), (P, pad_right)))
    x_halo = jnp.stack([x_p[:, :, t * step: t * step + win] for t in range(n_t)],
                       axis=1)                                 # (B, n_t, C_in_p, win)

    w_t = jnp.transpose(weight, (0, 2, 1))                     # (C_out, K, C_in)
    w_f = jnp.pad(w_t, ((0, C_out_p - C_out), (0, 0), (0, C_in_p - C_in)))
    w_f = w_f.reshape(C_out_p, K * C_in_p).astype(dt)          # (C_out_p, K*C_in_p)

    # ---- VMEM budgets from the actual windowed per-step buffers ----
    item = jnp.dtype(dt).itemsize
    x_blk = C_in_p * win * item
    w_blk = C_out_p * K * C_in_p * item
    slab_b = K * C_in_p * tile_t * item
    acc_b = C_out_p * tile_t * 4
    need1 = 2 * x_blk + 2 * w_blk + slab_b + 3 * acc_b + 2 * (C_out_p * 2 * 4)
    need2 = 2 * x_blk + 2 * w_blk + slab_b + 2 * acc_b \
        + 2 * (C_out_p * tile_t * 4) + 4 * C_out_p * 4
    vmem1 = min(max(need1 + (8 << 20), 16 << 20), 60 << 20)   # 60 MiB: v7x-safe, never binds here
    vmem2 = min(max(need2 + (8 << 20), 16 << 20), 60 << 20)

    # ---- pass 1: conv + per-tile BN partial sums (tiny output) ----
    kernel1 = functools.partial(_conv_stats_kernel, kernel_size=K, stride=stride,
                                dilation=dilation, tile_t=tile_t, t_out=T_out)
    stats = pl.pallas_call(
        kernel1,
        out_shape=jax.ShapeDtypeStruct((B, n_t, C_out_p, 2), jnp.float32),
        grid_spec=pltpu.PrefetchScalarGridSpec(
            num_scalar_prefetch=0,
            grid=(B, n_t),
            in_specs=[
                pl.BlockSpec((1, 1, C_in_p, win), lambda b, t: (b, t, 0, 0)),
                pl.BlockSpec((C_out_p, K * C_in_p), lambda b, t: (0, 0)),
            ],
            out_specs=pl.BlockSpec((1, 1, C_out_p, 2), lambda b, t: (b, t, 0, 0)),
        ),
        compiler_params=pltpu.CompilerParams(
            dimension_semantics=("parallel", "parallel"),
            vmem_limit_bytes=vmem1),
    )(x_halo, w_f)

    # ---- tiny XLA reduction: fold BN into per-channel scale/shift (f32) ----
    # TODO(synk): E[x^2]-E[x]^2 in f32 can cancel for large uncentered activations;
    # a two-level (per-tile mean / M2) combine would be more robust.
    count = B * T_out
    ssum = jnp.sum(stats[..., 0], axis=(0, 1))                 # (C_out_p,)
    ssq = jnp.sum(stats[..., 1], axis=(0, 1))
    mean = ssum / count
    var = jnp.maximum(ssq / count - mean * mean, 0.0)          # biased variance
    gamma_p = jnp.pad(gamma.astype(jnp.float32), (0, C_out_p - C_out))
    beta_p = jnp.pad(beta.astype(jnp.float32), (0, C_out_p - C_out))
    scale = gamma_p * jax.lax.rsqrt(var + eps)
    shift = beta_p - mean * scale
    scale2 = scale.reshape(C_out_p, 1)
    shift2 = shift.reshape(C_out_p, 1)

    # ---- pass 2: recompute conv + fused scale/shift + ReLU, emit NCW ----
    kernel2 = functools.partial(_conv_bn_relu_kernel, kernel_size=K, stride=stride,
                                dilation=dilation, tile_t=tile_t)
    out = pl.pallas_call(
        kernel2,
        out_shape=jax.ShapeDtypeStruct((B, C_out_p, T_out_grid), jnp.float32),
        grid_spec=pltpu.PrefetchScalarGridSpec(
            num_scalar_prefetch=0,
            grid=(B, n_t),
            in_specs=[
                pl.BlockSpec((1, 1, C_in_p, win), lambda b, t: (b, t, 0, 0)),
                pl.BlockSpec((C_out_p, K * C_in_p), lambda b, t: (0, 0)),
                pl.BlockSpec((C_out_p, 1), lambda b, t: (0, 0)),
                pl.BlockSpec((C_out_p, 1), lambda b, t: (0, 0)),
            ],
            out_specs=pl.BlockSpec((1, C_out_p, tile_t), lambda b, t: (b, 0, t)),
        ),
        compiler_params=pltpu.CompilerParams(
            dimension_semantics=("parallel", "parallel"),
            vmem_limit_bytes=vmem2),
    )(x_halo, w_f, scale2, shift2)

    # TODO(synk): running_mean/running_var buffer updates (training side effects)
    # are not materialized; mean/var above are available if a caller needs them.
    y = out
    if C_out_p != C_out or T_out_grid != T_out:
        y = out[:, :C_out, :T_out]
    out_lens = output_lengths(x_lengths, kernel_size, stride, dilation)
    return y, out_lens


# --------------------------------------------------------------------------- #
# Pure-JAX reference (Conv1d + bias + train-mode BN + ReLU)
# --------------------------------------------------------------------------- #
def _reference(x, params, kernel_size, stride, dilation, eps):
    B, C_in, T = x.shape
    C_out = params["weight"].shape[0]
    P = dilation * (kernel_size - 1) // 2
    T_out = (T + 2 * P - dilation * (kernel_size - 1) + stride - 1) // stride
    x_cl = jnp.transpose(x, (0, 2, 1))
    x_pad = jnp.pad(x_cl, ((0, 0), (P, P), (0, 0)))
    cols = [x_pad[:, k * dilation: k * dilation + stride * (T_out - 1) + 1: stride, :]
            for k in range(kernel_size)]
    xcol = jnp.concatenate(cols, axis=-1).reshape(B * T_out, kernel_size * C_in)
    w_flat = jnp.transpose(params["weight"], (2, 1, 0)).reshape(kernel_size * C_in, C_out)
    yc = xcol @ w_flat + params["bias"][None, :]     # bias kept: it cancels in BN
    mu = yc.mean(axis=0, keepdims=True)
    var = ((yc - mu) ** 2).mean(axis=0, keepdims=True)
    z = (yc - mu) / jnp.sqrt(var + eps) * params["gamma"] + params["beta"]
    return jnp.maximum(z, 0.0).reshape(B, T_out, C_out).transpose(0, 2, 1)


if __name__ == "__main__":
    eps = 1e-5
    key = jax.random.PRNGKey(0)
    k1, k2, k3, k4, k5, k6, k7, k8 = jax.random.split(key, 8)

    # ---- case 1: K=3, stride=1, dilation=1, f32 MXU path ----
    B, C_in, C_out, T = 2, 4, 8, 16
    x = jax.random.normal(k1, (B, C_in, T), dtype=jnp.float32)
    x_lengths = jnp.array([16, 12], dtype=jnp.int32)
    params = {
        "weight": 0.1 * jax.random.normal(k2, (C_out, C_in, 3), dtype=jnp.float32),
        "bias": 0.1 * jax.random.normal(k3, (C_out,), dtype=jnp.float32),
        "gamma": 1.0 + 0.1 * jax.random.normal(k4, (C_out,), dtype=jnp.float32),
        "beta": 0.1 * jax.random.normal(k5, (C_out,), dtype=jnp.float32),
    }
    y, lens = tdnn_bn_relu_forward(x, x_lengths, params, kernel_size=3, stride=1,
                                   dilation=1, eps=eps, use_bf16_matmul=False)
    y = jax.block_until_ready(y)
    ref = _reference(x, params, 3, 1, 1, eps)
    assert y.shape == (B, C_out, 16)
    err = float(jnp.max(jnp.abs(y - ref)))
    assert jnp.allclose(y, ref, atol=5e-4, rtol=5e-4), err
    assert jax.block_until_ready(lens).tolist() == [16, 12]

    # ---- case 2: default bf16-MXU path (f32 accumulation / statistics) ----
    y_bf, _ = tdnn_bn_relu_forward(x, x_lengths, params, kernel_size=3, stride=1,
                                   dilation=1, eps=eps)   # use_bf16_matmul=True
    y_bf = jax.block_until_ready(y_bf)
    err_bf = float(jnp.max(jnp.abs(y_bf - ref)))
    assert jnp.allclose(y_bf, ref, atol=0.1, rtol=0.1), err_bf

    # ---- case 3: dilation=2, ragged channel counts, f32 path ----
    C_in3, C_out3 = 5, 6
    x3 = jax.random.normal(k6, (B, C_in3, T), dtype=jnp.float32)
    x3_lengths = jnp.array([16, 10], dtype=jnp.int32)
    params3 = {
        "weight": 0.1 * jax.random.normal(k7, (C_out3, C_in3, 3), dtype=jnp.float32),
        "bias": jnp.zeros((C_out3,), dtype=jnp.float32),
        "gamma": 1.0 + 0.1 * jax.random.normal(k8, (C_out3,), dtype=jnp.float32),
        "beta": jnp.zeros((C_out3,), dtype=jnp.float32),
    }
    y3, lens3 = tdnn_bn_relu_forward(x3, x3_lengths, params3, kernel_size=3,
                                     stride=1, dilation=2, eps=eps,
                                     use_bf16_matmul=False)
    y3 = jax.block_until_ready(y3)
    ref3 = _reference(x3, params3, 3, 1, 2, eps)
    assert y3.shape == (B, C_out3, 16)
    err3 = float(jnp.max(jnp.abs(y3 - ref3)))
    assert jnp.allclose(y3, ref3, atol=5e-4, rtol=5e-4), err3
    assert jax.block_until_ready(lens3).tolist() == [16, 10]

    print("KERNEL_OK")
</pallas_src>

<mosaic_0001>
module attributes {stable_mosaic.version = 11 : i64} {
  func.func @_conv_stats_kernel(%arg0: i32, %arg1: i32, %arg2: memref<1x1x8x130xf32, #tpu.memory_space<vmem>>, %arg3: memref<8x24xf32, #tpu.memory_space<vmem>>, %arg4: memref<1x1x8x2xf32, #tpu.memory_space<vmem>>) attributes {dimension_semantics = [#tpu.dimension_semantics<parallel>, #tpu.dimension_semantics<parallel>], iteration_bounds = array<i64: 2, 1>, scalar_prefetch = 0 : i64, scratch_operands = 0 : i64, tpu.core_type = #tpu.core_type<tc>, window_params = [{transform_indices = @transform_0, window_bounds = array<i64: 1, 1, 8, 130>}, {pipeline_mode = #tpu.pipeline_mode<synchronous>, transform_indices = @transform_1, window_bounds = array<i64: 8, 24>}, {transform_indices = @transform_2, window_bounds = array<i64: 1, 1, 8, 2>}]} {
    %c0 = arith.constant 0 : index
    %c0_0 = arith.constant 0 : index
    %c0_1 = arith.constant 0 : index
    %c0_2 = arith.constant 0 : index
    %0 = vector.load %arg2[%c0, %c0_0, %c0_1, %c0_2] : memref<1x1x8x130xf32, #tpu.memory_space<vmem>>, vector<1x1x8x130xf32>
    %1 = vector.shape_cast %0 : vector<1x1x8x130xf32> to vector<8x130xf32>
    %2 = vector.extract_strided_slice %1 {offsets = [0, 0], sizes = [8, 128], strides = [1, 1]} : vector<8x130xf32> to vector<8x128xf32>
    %3 = vector.extract_strided_slice %1 {offsets = [0, 1], sizes = [8, 128], strides = [1, 1]} : vector<8x130xf32> to vector<8x128xf32>
    %4 = vector.extract_strided_slice %1 {offsets = [0, 2], sizes = [8, 128], strides = [1, 1]} : vector<8x130xf32> to vector<8x128xf32>
    %5 = tpu.concatenate %2, %3, %4 in 0 : vector<8x128xf32>, vector<8x128xf32>, vector<8x128xf32> -> vector<24x128xf32>
    %c0_3 = arith.constant 0 : index
    %c0_4 = arith.constant 0 : index
    %6 = vector.load %arg3[%c0_3, %c0_4] : memref<8x24xf32, #tpu.memory_space<vmem>>, vector<8x24xf32>
    %cst = arith.constant dense<0.000000e+00> : vector<8x128xf32>
    %7 = tpu.matmul %6, %5, %cst {dimension_numbers = #tpu.dot_dimension_numbers<[1], [0], [0], [1], [0, 0, 1, 1], [], []>} : vector<8x24xf32>, vector<24x128xf32>, vector<8x128xf32> -> vector<8x128xf32>
    %8 = tpu.iota {dimensions = array<i32: 1>} : vector<1x128xi32>
    %c128_i32 = arith.constant 128 : i32
    %9 = arith.muli %arg1, %c128_i32 : i32
    %c16_i32 = arith.constant 16 : i32
    %10 = arith.subi %c16_i32, %9 : i32
    %11 = vector.broadcast %10 : i32 to vector<1x128xi32>
    %12 = arith.cmpi slt, %8, %11 : vector<1x128xi32>
    %cst_5 = arith.constant 0.000000e+00 : f32
    %13 = vector.shape_cast %12 : vector<1x128xi1> to vector<1x128xi1>
    %14 = vector.broadcast %13 : vector<1x128xi1> to vector<8x128xi1>
    %15 = vector.broadcast %cst_5 : f32 to vector<8x128xf32>
    %16 = arith.select %14, %7, %15 : vector<8x128xi1>, vector<8x128xf32>
    %cst_6 = arith.constant dense<0.000000e+00> : vector<8xf32>
    %17 = vector.multi_reduction <add>, %16, %cst_6 [1] : vector<8x128xf32> to vector<8xf32>
    %18 = vector.shape_cast %17 : vector<8xf32> to vector<8x1xf32>
    %19 = arith.mulf %16, %16 : vector<8x128xf32>
    %cst_7 = arith.constant dense<0.000000e+00> : vector<8xf32>
    %20 = vector.multi_reduction <add>, %19, %cst_7 [1] : vector<8x128xf32> to vector<8xf32>
    %21 = vector.shape_cast %20 : vector<8xf32> to vector<8x1xf32>
    %22 = tpu.concatenate %18, %21 in 1 : vector<8x1xf32>, vector<8x1xf32> -> vector<8x2xf32>
    %c0_8 = arith.constant 0 : index
    %c0_9 = arith.constant 0 : index
    %c0_10 = arith.constant 0 : index
    %c0_11 = arith.constant 0 : index
    %23 = vector.load %arg4[%c0_8, %c0_9, %c0_10, %c0_11] : memref<1x1x8x2xf32, #tpu.memory_space<vmem>>, vector<1x1x8x2xf32>
    %24 = vector.shape_cast %23 : vector<1x1x8x2xf32> to vector<8x2xf32>
    %25 = vector.shape_cast %22 : vector<8x2xf32> to vector<1x1x8x2xf32>
    tpu.vector_store %arg4[%c0_8, %c0_9, %c0_10, %c0_11], %25 {strides = array<i32>} : memref<1x1x8x2xf32, #tpu.memory_space<vmem>>, vector<1x1x8x2xf32>,
    return
  }
  func.func @transform_0(%arg0: i32, %arg1: i32) -> (i32, i32, i32, i32) {
    %c0_i32 = arith.constant 0 : i32
    %c0_i32_0 = arith.constant 0 : i32
    %c0_i32_1 = arith.constant 0 : i32
    return %arg0, %arg1, %c0_i32, %c0_i32_0 : i32, i32, i32, i32
  }
  func.func @transform_1(%arg0: i32, %arg1: i32) -> (i32, i32) {
    %c0_i32 = arith.constant 0 : i32
    %c0_i32_0 = arith.constant 0 : i32
    %c0_i32_1 = arith.constant 0 : i32
    return %c0_i32, %c0_i32_0 : i32, i32
  }
  func.func @transform_2(%arg0: i32, %arg1: i32) -> (i32, i32, i32, i32) {
    %c0_i32 = arith.constant 0 : i32
    %c0_i32_0 = arith.constant 0 : i32
    %c0_i32_1 = arith.constant 0 : i32
    return %arg0, %arg1, %c0_i32, %c0_i32_0 : i32, i32, i32, i32
  }
}

</mosaic_0001>

<llo_original>
// kernel: tpu_custom_call.1
$region0: #{tpu_custom_call.1}
  #allocation0 [shape = 'u32[]', space=smem, size = 0x4, offset = 0x4, fixed_abs, tag = 'smem constant byte address 0x4 - core index']
  #allocation1 [shape = 'u32[144,128]{1,0:T(1,128)}', space=vmem, size = 0x12000, scoped, tag = 'internal scratch']
  %s0 = inlined_call_operand.hbm [shape: f32[2,1,8,130], index: 0, kind: input, shape index: {}]
  %s1 = inlined_call_operand.hbm [shape: f32[8,24], index: 1, kind: input, shape index: {}]
  %s2 = inlined_call_operand.vmem [shape: f32[2,1,8,2], index: 2, kind: output, shape index: {}]
  %s3 = sld [smem:[#allocation0]]
  $region49: #{tpu_custom_call.1} parent=0
    _
  %s5 = ssub.s32 1, %s3
  %s6 = scalar_select 0, %s5, %s3
  $region1: #{tpu_custom_call.1} parent=0
    #allocation2 [shape = 'u8[16384]{0}', space=vmem, size = 0x4000, scoped, tag = 'input window, operand 0']
    #allocation3 [shape = 's32[2]{0}', space=sflag, size = 0x8, scoped, tag = 'scoped memory for tpu_custom_call.1']
    #allocation4 [shape = 'u8[4096]{0}', space=vmem, size = 0x1000, scoped, tag = 'input window, operand 1, single buffered']
    #allocation5 [shape = 's32[1]{0}', space=sflag, size = 0x4, scoped, tag = 'scoped memory for tpu_custom_call.1']
    %7 = vsyncpa [#allocation3], 0
    %s8 = scalar_lea.sflag [#allocation3], 1
    %9 = vsyncpa %s8, 0
    %10 = vsyncpa [#allocation5], 0
    loop: start=0, step=1, limit=4
    $region2: #{tpu_custom_call.1} parent=1 // loop_pre_header
      _
    $region3: #{tpu_custom_call.1} parent=1 // loop_header
      %s12 = sphi 0, %s16
      %p13 = scmp.ge.s32.totalorder %s12, 4
      %s19 = sphi 0, %s31
      %s20 = sphi 0, %s27
      %s21 = sphi 0, %s19
      %s22 = sphi 0, %s20
      %s23 = sphi 0, %s21
      %s24 = sphi 0, %s22
      %s36 = sphi 0, %s38
      %s39 = sphi 0, %s36
      %s40 = sphi 0, %s39
      %s56 = sphi 0, %s40
      %s60 = sphi 0, %s60
      %s62 = sphi 0, %s60
      %s63 = sphi 0, %s62
      %s77 = sphi 0, %s63
      %s85 = sphi 0, %s87
      %s88 = sphi 0, %s85
      %s89 = sphi 0, %s88
      %s105 = sphi 0, %s89
    $region4: #{tpu_custom_call.1} parent=1 // loop_header_branch
      %15 = sbr.rel (%p13) target = $region8
    $region5: #{tpu_custom_call.1} parent=1 // loop_body
      %s17 = ssub.s32 %s12, 1
      %s18 = ssub.s32 %s12, 2
      %s25 = sadd.s32 1, %s20
      %p26 = scmp.ge.s32.totalorder %s25, 1
      %s27 = scalar_select %p26, 0, %s25
      %s28 = sadd.s32 1, %s19
      %s29 = scalar_select %p26, %s28, %s19
      %p30 = scmp.ge.s32.totalorder %s29, 2
      %s31 = scalar_select %p30, 0, %s29
      %s32 = ssub.s32 %s19, %s31
      %s33 = ssub.s32 %s20, %s27
      %s34 = sor.u32 %s32, %s33
      %p35 = scmp.eq.s32.totalorder %s34, 0
      %s37 = sadd.s32 %s36, 1
      %s38 = scalar_select %p35, %s36, %s37
      %p41 = pneg %p35
      %p42 = scmp.eq.s32.totalorder %s12, 1
      %p43 = por %p41, %p42
      %p44 = scmp.ne.s32.totalorder %s36, %s39
      %p45 = scmp.eq.s32.totalorder %s12, 0
      %p46 = por %p44, %p45
      %p47 = scmp.ne.s32.totalorder %s36, %s39
      %p48 = scmp.eq.s32.totalorder %s17, 1
      %p49 = por %p47, %p48
      %p50 = scmp.ne.s32.totalorder %s39, %s40
      %p51 = scmp.eq.s32.totalorder %s17, 0
      %p52 = por %p50, %p51
      %p53 = scmp.ne.s32.totalorder %s39, %s40
      %p54 = scmp.eq.s32.totalorder %s18, 1
      %p55 = por %p53, %p54
      %p57 = scmp.ne.s32.totalorder %s40, %s56
      %p58 = scmp.eq.s32.totalorder %s18, 0
      %p59 = por %p57, %p58
      %s61 = sadd.s32 %s60, 1
      %p64 = scmp.eq.s32.totalorder %s12, 1
      %p65 = scmp.ne.s32.totalorder %s60, %s62
      %p66 = scmp.eq.s32.totalorder %s12, 0
      %p67 = por %p65, %p66
      %p68 = scmp.ne.s32.totalorder %s60, %s62
      %p69 = scmp.eq.s32.totalorder %s17, 1
      %p70 = por %p68, %p69
      %p71 = scmp.ne.s32.totalorder %s62, %s63
      %p72 = scmp.eq.s32.totalorder %s17, 0
      %p73 = por %p71, %p72
      %p74 = scmp.ne.s32.totalorder %s62, %s63
      %p75 = scmp.eq.s32.totalorder %s18, 1
      %p76 = por %p74, %p75
      %p78 = scmp.ne.s32.totalorder %s63, %s77
      %p79 = scmp.eq.s32.totalorder %s18, 0
      %p80 = por %p78, %p79
      %s81 = ssub.s32 %s19, %s31
      %s82 = ssub.s32 %s20, %s27
      %s83 = sor.u32 %s81, %s82
      %p84 = scmp.eq.s32.totalorder %s83, 0
      %s86 = sadd.s32 %s85, 1
      %s87 = scalar_select %p84, %s85, %s86
      %p90 = pneg %p84
      %p91 = scmp.eq.s32.totalorder %s12, 1
      %p92 = por %p90, %p91
      %p93 = scmp.ne.s32.totalorder %s85, %s88
      %p94 = scmp.eq.s32.totalorder %s12, 0
      %p95 = por %p93, %p94
      %p96 = scmp.ne.s32.totalorder %s85, %s88
      %p97 = scmp.eq.s32.totalorder %s17, 1
      %p98 = por %p96, %p97
      %p99 = scmp.ne.s32.totalorder %s88, %s89
      %p100 = scmp.eq.s32.totalorder %s17, 0
      %p101 = por %p99, %p100
      %p102 = scmp.ne.s32.totalorder %s88, %s89
      %p103 = scmp.eq.s32.totalorder %s18, 1
      %p104 = por %p102, %p103
      %p106 = scmp.ne.s32.totalorder %s89, %s105
      %p107 = scmp.eq.s32.totalorder %s18, 0
      %p108 = por %p106, %p107
      %p109 = scmp.le.s32.totalorder 1, %s12
      %p110 = scmp.lt.s32.totalorder %s12, 3
      %p111 = pnand %p109, %p110
      %p112 = pneg %p111
      // Predicated region
      $region9: #{tpu_custom_call.1} parent=5 // pred_check
        _
      $region10: #{tpu_custom_call.1} parent=5 // pred_check_branch
        %114 = sbr.rel (%p111) target = $region12
      $region11: #{tpu_custom_call.1} parent=5 // pred_region
        %s115 = ssub.s32 %s12, 1
        // Predicated region
        $region13: #{tpu_custom_call.1} parent=11 // pred_check
          %p116 = pneg %p73
        $region14: #{tpu_custom_call.1} parent=11 // pred_check_branch
          %118 = sbr.rel (%p116) target = $region16
        $region15: #{tpu_custom_call.1} parent=11 // pred_region
          %s120 = ssub.s32 128, 128
          %121 = vsyncadd [#allocation5], %s120
          %s123 = sshll.u32 [#allocation4], 4
          %s124 = int_to_ptr.vmem [resolvable:$true] %s123
          %126 = dma.hbm_to_vmem [thread:$0]  %s1, 128, %s124, [#allocation5]
        $region16: #{tpu_custom_call.1} parent=11 // pred_fallthru
          _
      $region12: #{tpu_custom_call.1} parent=5 // pred_fallthru
        _
      %p127 = scmp.lt.s32.totalorder %s12, 2
      // Predicated region
      $region17: #{tpu_custom_call.1} parent=5 // pred_check
        %p128 = pneg %p127
      $region18: #{tpu_custom_call.1} parent=5 // pred_check_branch
        %130 = sbr.rel (%p128) target = $region20
      $region19: #{tpu_custom_call.1} parent=5 // pred_region
        // Predicated region
        $region21: #{tpu_custom_call.1} parent=19 // pred_check
          %p131 = pneg %p46
        $region22: #{tpu_custom_call.1} parent=19 // pred_check_branch
          %133 = sbr.rel (%p131) target = $region24
        $region23: #{tpu_custom_call.1} parent=19 // pred_region
          %s134 = sand.u32 %s36, 1
          %s135 = scalar_lea.sflag [#allocation3], %s134
          %s136 = sand.u32 %s36, 1
          %s137 = smul.addr %s136, 16
          %s138 = scalar_lea.vmem [#allocation2], %s137
          %s140 = ssub.s32 256, 256
          %141 = vsyncadd %s135, %s140
          %s142 = smul.addr %s20, 2
          %s143 = smul.addr %s19, 2
          %s144 = sadd.s32 %s142, %s143
          %s145 = smul.addr %s144, 128
          %s146 = scalar_lea.hbm %s0, %s145
          %s148 = sshll.u32 %s138, 4
          %s149 = int_to_ptr.vmem [resolvable:$true] %s148
          %151 = dma.hbm_to_vmem [thread:$0]  %s146, 256, %s149, %s135
        $region24: #{tpu_custom_call.1} parent=19 // pred_fallthru
          _
      $region20: #{tpu_custom_call.1} parent=5 // pred_fallthru
        _
      %p152 = scmp.le.s32.totalorder 1, %s12
      %p153 = scmp.lt.s32.totalorder %s12, 3
      %p154 = pnand %p152, %p153
      %p155 = pneg %p154
      // Predicated region
      $region25: #{tpu_custom_call.1} parent=5 // pred_check
        _
      $region26: #{tpu_custom_call.1} parent=5 // pred_check_branch
        %157 = sbr.rel (%p154) target = $region28
      $region27: #{tpu_custom_call.1} parent=5 // pred_region
        %s158 = ssub.s32 %s12, 1
        %s159 = sand.u32 %s39, 1
        %s160 = scalar_lea.sflag [#allocation3], %s159
        %s161 = sand.u32 %s39, 1
        %s162 = smul.addr %s161, 16
        %s163 = scalar_lea.vmem [#allocation2], %s162
        // Predicated region
        $region29: #{tpu_custom_call.1} parent=27 // pred_check
          %p164 = pneg %p52
        $region30: #{tpu_custom_call.1} parent=27 // pred_check_branch
          %166 = sbr.rel (%p164) target = $region32
        $region31: #{tpu_custom_call.1} parent=27 // pred_region
          %167 = dma.done %s160, 256
        $region32: #{tpu_custom_call.1} parent=27 // pred_fallthru
          _
        // Predicated region
        $region33: #{tpu_custom_call.1} parent=27 // pred_check
          %p168 = pneg %p73
        $region34: #{tpu_custom_call.1} parent=27 // pred_check_branch
          %170 = sbr.rel (%p168) target = $region36
        $region35: #{tpu_custom_call.1} parent=27 // pred_region
          %171 = dma.done [#allocation5], 128
        $region36: #{tpu_custom_call.1} parent=27 // pred_fallthru
          _
        %s172 = sand.u32 %s39, 1
        %s173 = scalar_lea.sflag [#allocation3], %s172
        %s174 = sand.u32 %s39, 1
        %s175 = smul.addr %s174, 16
        %s176 = scalar_lea.vmem [#allocation2], %s175
        %p177 = pneg %p52
        %p178 = pneg %p49
        %p179 = pneg %p73
        %p180 = pneg %p70
        %p181 = pneg %p101
        %p182 = pneg %p98
        %p183 = scmp.lt.s32.totalorder %s21, 1
        %s184 = scalar_select %p183, %s21, 1
        %p185 = scmp.lt.s32.totalorder %s22, 0
        %s186 = scalar_select %p185, %s22, 0
        %s187 = sadd.s32 %s186, %s184
        %s188 = smul.addr %s187, 8
        %s189 = scalar_lea.vmem %s2, %s188
        %p190 = scmp.lt.s32.totalorder %s21, 1
        %s191 = scalar_select %p190, %s21, 1
        %p192 = scmp.lt.s32.totalorder %s22, 0
        %s193 = scalar_select %p192, %s22, 0
        %s194 = sadd.s32 %s193, %s191
        %s195 = smul.addr %s194, 8
        %s196 = scalar_lea.vmem %s2, %s195
        %v197 = vld [vmem:[%s163] sm:$0xff]
        %v198 = vld [vmem:[%s163 + $0x8] sm:$0xff]
        %201 = vrot.lane.b32.xlu0 %v197, 127
        %v202 = vpop.permute.xlu0 %201
        %203 = vrot.lane.b32.xlu0 %v198, 127
        %v204 = vpop.permute.xlu0 %203
        %vm205 = vcmask 1039360
        %v206 = vsel %vm205, %v202, %v204
        %208 = vrot.lane.b32.xlu0 %v197, 126
        %v209 = vpop.permute.xlu0 %208
        %210 = vrot.lane.b32.xlu0 %v198, 126
        %v211 = vpop.permute.xlu0 %210
        %vm212 = vcmask 1031168
        %v213 = vsel %vm212, %v209, %v211
        %v215 = vld [vmem:[#allocation4] sm:$0xff]
        %vm216 = vcmask 195584
        %v218 = vsel %vm216, %v215, 0
        %220 = vmatprep.subr.mxu0 0.0
        %221 = vmatpush1.msra.mxu0 %v197
        %222 = vmatprep.subr.mxu0 0.0
        %223 = vmatpush1.msra.mxu0 %v206
        %224 = vmatprep.subr.mxu0 0.0
        %225 = vmatpush1.msra.mxu0 %v213
        %226 = vmatprep.subr.mxu0 0.0
        %227 = vmatpush1.msra.mxu0 0.0
        %228 = vmatprep.subr.mxu0 0.0
        %229 = vmatpush1.msra.mxu0 0.0
        %230 = vmatprep.subr.mxu0 0.0
        %231 = vmatpush1.msra.mxu0 0.0
        %232 = vmatprep.subr.mxu0 0.0
        %233 = vmatpush1.msra.mxu0 0.0
        %234 = vmatprep.subr.mxu0 0.0
        %235 = vmatpush1.msra.mxu0 0.0
        %236 = vmatprep.subr.mxu0 0.0
        %237 = vmatpush1.msra.mxu0 0.0
        %238 = vmatprep.subr.mxu0 0.0
        %239 = vmatpush1.msra.mxu0 0.0
        %240 = vmatprep.subr.mxu0 0.0
        %241 = vmatpush1.msra.mxu0 0.0
        %242 = vmatprep.subr.mxu0 0.0
        %243 = vmatpush1.msra.mxu0 0.0
        %244 = vmatprep.subr.mxu0 0.0
        %245 = vmatpush1.msra.mxu0 0.0
        %246 = vmatprep.subr.mxu0 0.0
        %247 = vmatpush1.msra.mxu0 0.0
        %248 = vmatprep.subr.mxu0 0.0
        %249 = vmatpush1.msra.mxu0 0.0
        %250 = vmatprep.subr.mxu0 0.0
        %251 = vmatpush1.msra.mxu0 0.0
        %252 = vmatprep.subr.mxu0 0.0
        %253 = vmatpush1.msra.mxu0 0.0
        %254 = vmatprep.subr.mxu0 0.0
        %255 = vmatpush1.msra.mxu0 0.0
        %256 = vmatprep.subr.mxu0 0.0
        %257 = vmatpush1.msra.mxu0 0.0
        %258 = vmatprep.subr.mxu0 0.0
        %259 = vmatpush1.msra.mxu0 0.0
        %260 = vmatprep.subr.mxu0 0.0
        %261 = vmatpush1.msra.mxu0 0.0
        %262 = vmatprep.subr.mxu0 0.0
        %263 = vmatpush1.msra.mxu0 0.0
        %264 = vmatprep.subr.mxu0 0.0
        %265 = vmatpush1.msra.mxu0 0.0
        %266 = vmatprep.subr.mxu0 0.0
        %267 = vmatpush1.msra.mxu0 0.0
        %268 = vmatprep.subr.mxu0 0.0
        %269 = vmatpush1.msra.mxu0 0.0
        %270 = vmatprep.subr.mxu0 0.0
        %271 = vmatpush1.msra.mxu0 0.0
        %272 = vmatprep.subr.mxu0 0.0
        %273 = vmatpush1.msra.mxu0 0.0
        %274 = vmatprep.subr.mxu0 0.0
        %275 = vmatpush1.msra.mxu0 0.0
        %276 = vmatprep.subr.mxu0 0.0
        %277 = vmatpush1.msra.mxu0 0.0
        %278 = vmatprep.subr.mxu0 0.0
        %279 = vmatpush1.msra.mxu0 0.0
        %280 = vmatprep.subr.mxu0 0.0
        %281 = vmatpush1.msra.mxu0 0.0
        %282 = vmatprep.subr.mxu0 0.0
        %283 = vmatpush1.msra.mxu0 0.0
        %284 = vmatprep.mubr.f32.mxu0 0.0
        %285 = vmatmul.mubr.f32.gmra.mrb[0].mxu0 %v218
        %v286 = vpop.f32.mrb[0].mxu0
        %v287 = vadd.f32 0.0, %v286
        %v288 = vpop.f32.mrb[0].mxu0
        %289 = vdwg.mxu0
        %v290 = vlaneseq
        %v291 = vand.u32 %v290, 127
        %s292 = smul.u32 %s22, 128
        %s293 = ssub.s32 16, %s292
        %v294 = vstv %s293
        %vm295 = vcmp.lt.s32.totalorder %v291, %v294
        %v296 = vsel %vm295, 1, 0
        %vm297 = vcmp.eq.s32.totalorder %v296, 1
        %v298 = vsel %vm297, %v287, 0.0
        %299 = vadd.xlane.f32.xlu0 %v298
        %v300 = vpop.xlane.xlu0 %299
        %v301 = vmul.f32 %v298, %v298
        %302 = vadd.xlane.f32.xlu0 %v301
        %v303 = vpop.xlane.xlu0 %302
        %vm304 = vcmask 7168
        %v305 = vsel %vm304, %v300, %v303
        %vm306 = vcmask 15360
        %307 = vst.msk [vmem:[%s196] sm:$0xff] %vm306, %v305
        %p308 = scmp.lt.s32.totalorder %s21, 1
        %s309 = scalar_select %p308, %s21, 1
        %p310 = scmp.lt.s32.totalorder %s22, 0
        %s311 = scalar_select %p310, %s22, 0
        %s312 = sadd.s32 %s311, %s309
        %s313 = smul.addr %s312, 8
        %s314 = scalar_lea.vmem %s2, %s313
        // Predicated region
        $region37: #{tpu_custom_call.1} parent=27 // pred_check
          %p315 = pneg %p98
        $region38: #{tpu_custom_call.1} parent=27 // pred_check_branch
          %317 = sbr.rel (%p315) target = $region40
        $region39: #{tpu_custom_call.1} parent=27 // pred_region
          _
        $region40: #{tpu_custom_call.1} parent=27 // pred_fallthru
          _
      $region28: #{tpu_custom_call.1} parent=5 // pred_fallthru
        _
      %p318 = scmp.le.s32.totalorder 2, %s12
      // Predicated region
      $region41: #{tpu_custom_call.1} parent=5 // pred_check
        %p319 = pneg %p318
      $region42: #{tpu_custom_call.1} parent=5 // pred_check_branch
        %321 = sbr.rel (%p319) target = $region44
      $region43: #{tpu_custom_call.1} parent=5 // pred_region
        %s322 = ssub.s32 %s12, 2
        // Predicated region
        $region45: #{tpu_custom_call.1} parent=43 // pred_check
          %p323 = pneg %p104
        $region46: #{tpu_custom_call.1} parent=43 // pred_check_branch
          %325 = sbr.rel (%p323) target = $region48
        $region47: #{tpu_custom_call.1} parent=43 // pred_region
          %p326 = scmp.lt.s32.totalorder %s23, 1
          %s327 = scalar_select %p326, %s23, 1
          %p328 = scmp.lt.s32.totalorder %s24, 0
          %s329 = scalar_select %p328, %s24, 0
          %s330 = sadd.s32 %s329, %s327
          %s331 = smul.addr %s330, 8
          %s332 = scalar_lea.vmem %s2, %s331
        $region48: #{tpu_custom_call.1} parent=43 // pred_fallthru
          _
      $region44: #{tpu_custom_call.1} parent=5 // pred_fallthru
        _
    $region6: #{tpu_custom_call.1} parent=1 // loop_footer
      %s16 = sadd.s32 1, %s12
    $region7: #{tpu_custom_call.1} parent=1 // loop_footer_branch
      %11 = sbr.rel target = $region3
    $region8: #{tpu_custom_call.1} parent=1 // loop_exit
      _
    %333 = vsyncpa [#allocation3], 1
    %s334 = scalar_lea.sflag [#allocation3], 1
    %335 = vsyncpa %s334, 1
    %336 = vsyncpa [#allocation5], 1

</llo_original>
